<compile_context>
chip_gen: v7x
topology: tpu7x:2x2x1
jax: 0.10.0
libtpu: 0.0.40
codegen_flags: <defaults>
</compile_context>

<pallas_src>
import functools

import jax
import jax.numpy as jnp
from jax.experimental import pallas as pl
from jax.experimental.pallas import tpu as pltpu


def _round_up(x, m):
    return ((x + m - 1) // m) * m


# ----------------------------------------------------------------------------
# Pallas kernel: fused stacked-window matmul -> instance-norm -> relu (per n).
# ----------------------------------------------------------------------------
def _deconv_in_relu_kernel(x_ref, w_ref, o_ref, *, K, W_pad, W_out, H_out,
                           Lw, pad_rows, inv_count, eps):
    # x_ref: (1, Cin_p, LP)   bf16 zero-dilated + padded input, flat spatial
    # w_ref: (Cout_p, KKC_p)  bf16 flipped weights, single dense lane tile
    # o_ref: (1, Cout_p, Lw)  f32 output (flat spatial, lane-dense)

    # --- build the (KKC_p, Lw) stacked shifted-window operand ----------------
    # One static unaligned lane-slice per tap (realignment paid exactly once
    # per tap), stacked along the sublane axis in f32 so every 8-row piece is
    # an exact (8,128)-tile row.  No im2col in HBM.
    xf = x_ref[0].astype(jnp.float32)                       # (Cin_p, LP)
    taps = []
    for kh in range(K):
        for kw in range(K):
            off = kh * W_pad + kw
            taps.append(xf[:, off:off + Lw])                # (Cin_p, Lw)
    if pad_rows:
        taps.append(jnp.zeros((pad_rows, Lw), jnp.float32))
    xstack = jnp.concatenate(taps, axis=0)                  # (KKC_p, Lw)

    # --- single fused MXU matmul (contraction = K*K*Cin_p, padded) ----------
    acc = jnp.dot(w_ref[...].astype(jnp.float32), xstack,
                  preferred_element_type=jnp.float32)       # (Cout_p, Lw)

    # --- validity mask, generated in-kernel (no DMA'd mask array) -----------
    # col = p mod W_pad via exact f32 floor-division (avoids vector i32
    # div/rem); exact for p < 2^24.
    f = jax.lax.broadcasted_iota(jnp.int32, (1, Lw), 1).astype(jnp.float32)
    row = jnp.floor((f + 0.5) * (1.0 / W_pad))
    col = f - row * float(W_pad)
    valid = (f < float(H_out * W_pad)) & (col < float(W_out) - 0.5)
    mask = jnp.where(valid, 1.0, 0.0)                       # (1, Lw) f32

    # --- InstanceNorm2d (affine=False, biased var, eps) + ReLU --------------
    # HW lives on the lane axis -> cross-lane XLU reduce, full-lane VPU math.
    # Padded Cout rows give var=0 -> y=0 only because of eps; keep eps.
    # (ConvTranspose bias is omitted: mean subtraction cancels it exactly.)
    mean = jnp.sum(acc * mask, axis=1, keepdims=True) * inv_count
    cen = (acc - mean) * mask
    var = jnp.sum(cen * cen, axis=1, keepdims=True) * inv_count
    y = cen * jax.lax.rsqrt(var + eps)
    o_ref[0] = jnp.maximum(y, 0.0).astype(o_ref.dtype)      # ReLU


# ----------------------------------------------------------------------------
# Wrapper: single-scatter input glue, pallas_call, un-pad.
# ----------------------------------------------------------------------------
@functools.partial(jax.jit, static_argnames=("stride", "kernel_size"))
def deconv2d_forward(x, weight, bias, *, stride, kernel_size):
    """Fused ConvTranspose2d(stride,K) -> InstanceNorm2d(affine=False) -> ReLU.

    x: [N, Cin, H, W]; weight: [Cin, Cout, K, K] (ConvTranspose2d layout).
    bias: [Cout] -- intentionally unused: InstanceNorm2d(affine=False) mean
    subtraction cancels a per-channel bias exactly.
    Returns [N, Cout, H_out, W_out] float32.
    """
    del bias  # cancelled by InstanceNorm (affine=False) -- see docstring.

    N, Cin, H, W = x.shape
    K, S = kernel_size, stride
    Cout = weight.shape[1]

    H_d = (H - 1) * S + 1
    W_d = (W - 1) * S + 1
    H_out = H_d + K - 1
    W_out = W_d + K - 1
    W_pad = W_d + 2 * (K - 1)
    # Row-wrap invariant: a valid output column ow < W_out never reads past the
    # end of its padded row (needs W_pad >= W_out + K - 1).  The in-kernel mask
    # relies on this to keep wrap-around garbage out of the IN statistics.
    assert W_pad - W_out == K - 1, "padding invariant violated"

    Cin_p = _round_up(Cin, 8)                  # sublane-aligned channels
    Cout_p = _round_up(Cout, 8)
    Lw = _round_up(H_out * W_pad, 128)         # lane-dense flat output window
    max_off = (K - 1) * W_pad + (K - 1)
    LP = _round_up(max_off + Lw, 128)          # padded flat input length
    KKC = K * K * Cin_p                        # fused contraction depth
    KKC_p = _round_up(KKC, 128)                # lane-dense weight tile width

    # --- input glue: ONE scatter into the final-shape zero buffer (bf16) ----
    hh = jnp.arange(H) * S + (K - 1)
    ww = jnp.arange(W) * S + (K - 1)
    flat_idx = (hh[:, None] * W_pad + ww[None, :]).reshape(-1)      # (H*W,)
    x_src = jnp.pad(x, ((0, 0), (0, Cin_p - Cin), (0, 0), (0, 0)))
    x_src = x_src.reshape(N, Cin_p, H * W).astype(jnp.bfloat16)
    x_flat = jnp.zeros((N, Cin_p, LP), jnp.bfloat16)
    x_flat = x_flat.at[:, :, flat_idx].set(x_src)

    # --- weights: flipped, fused-contraction layout (Cout_p, K*K*Cin_p) -----
    # w2[co, (kh*K+kw)*Cin_p + ci] = weight[ci, co, K-1-kh, K-1-kw]
    w_flip = weight[:, :, ::-1, ::-1]                               # (Cin,Cout,K,K)
    w_t = jnp.transpose(w_flip, (2, 3, 0, 1))                       # (K,K,Cin,Cout)
    w_t = jnp.pad(w_t, ((0, 0), (0, 0), (0, Cin_p - Cin), (0, Cout_p - Cout)))
    w2 = jnp.transpose(w_t, (3, 0, 1, 2)).reshape(Cout_p, KKC)
    w2 = jnp.pad(w2, ((0, 0), (0, KKC_p - KKC))).astype(jnp.bfloat16)

    kernel = functools.partial(
        _deconv_in_relu_kernel, K=K, W_pad=W_pad, W_out=W_out, H_out=H_out,
        Lw=Lw, pad_rows=KKC_p - KKC, inv_count=1.0 / float(H_out * W_out),
        eps=1e-5)

    cost = pl.CostEstimate(
        flops=2 * N * Cout_p * KKC_p * Lw + 8 * N * Cout_p * Lw,
        transcendentals=N * Cout_p,
        bytes_accessed=x_flat.size * 2 + w2.size * 2 + N * Cout_p * Lw * 4)

    out = pl.pallas_call(
        kernel,
        out_shape=jax.ShapeDtypeStruct((N, Cout_p, Lw), jnp.float32),
        grid_spec=pltpu.PrefetchScalarGridSpec(
            num_scalar_prefetch=0,
            grid=(N,),   # 2 parallel steps -> both v7x TCs busy; one extra
                         # ~0.35us serial step on single-TC v5e/v6e.
            in_specs=[
                pl.BlockSpec((1, Cin_p, LP), lambda n: (n, 0, 0)),
                pl.BlockSpec((Cout_p, KKC_p), lambda n: (0, 0)),
            ],
            out_specs=pl.BlockSpec((1, Cout_p, Lw), lambda n: (n, 0, 0)),
        ),
        compiler_params=pltpu.CompilerParams(
            dimension_semantics=("parallel",)),
        cost_estimate=cost,
    )(x_flat, w2)

    # (N, Cout_p, Lw) -> NCHW, dropping channel / spatial padding.
    out = out[:, :Cout, :H_out * W_pad]
    out = out.reshape(N, Cout, H_out, W_pad)[:, :, :, :W_out]
    return out


# ----------------------------------------------------------------------------
# Pure-JAX reference (for verification only).
# ----------------------------------------------------------------------------
def reference_forward(x, weight, bias, *, stride, kernel_size):
    K = kernel_size
    w_oihw = jnp.transpose(weight[:, :, ::-1, ::-1], (1, 0, 2, 3))
    y = jax.lax.conv_general_dilated(
        x, w_oihw,
        window_strides=(1, 1),
        padding=[(K - 1, K - 1), (K - 1, K - 1)],
        lhs_dilation=(stride, stride),
        dimension_numbers=("NCHW", "OIHW", "NCHW"),
    )
    y = y + bias[None, :, None, None]
    mean = y.mean(axis=(2, 3), keepdims=True)
    var = ((y - mean) ** 2).mean(axis=(2, 3), keepdims=True)
    y_n = (y - mean) / jnp.sqrt(var + 1e-5)
    return jnp.maximum(y_n, 0.0)


if __name__ == "__main__":
    # Deconv_2d(in_channels=4, out_channels=8, stride=2, kernel_size=3)
    in_channels, out_channels = 4, 8
    stride, kernel_size = 2, 3
    N, H, W = 2, 8, 8

    key = jax.random.PRNGKey(0)
    kx, kw, kb = jax.random.split(key, 3)
    x = jax.random.normal(kx, (N, in_channels, H, W), jnp.float32)
    weight = 0.1 * jax.random.normal(
        kw, (in_channels, out_channels, kernel_size, kernel_size), jnp.float32)
    bias = 0.1 * jax.random.normal(kb, (out_channels,), jnp.float32)

    out = deconv2d_forward(x, weight, bias, stride=stride,
                           kernel_size=kernel_size)
    out = jax.block_until_ready(out)

    ref = reference_forward(x, weight, bias, stride=stride,
                            kernel_size=kernel_size)
    assert out.shape == ref.shape == (N, out_channels,
                                      (H - 1) * stride + kernel_size,
                                      (W - 1) * stride + kernel_size)
    # Tolerance reflects bf16 rounding of the HBM operands (compute is f32).
    err = float(jnp.max(jnp.abs(out - ref)))
    assert jnp.allclose(out, ref, atol=2e-2, rtol=2e-2), err

    print("KERNEL_OK")
</pallas_src>

<mosaic_0001>
module attributes {stable_mosaic.version = 11 : i64} {
  func.func @_deconv_in_relu_kernel(%arg0: i32, %arg1: memref<1x8x512xbf16, #tpu.memory_space<vmem>>, %arg2: memref<8x128xbf16, #tpu.memory_space<vmem>>, %arg3: memref<1x8x384xf32, #tpu.memory_space<vmem>>) attributes {dimension_semantics = [#tpu.dimension_semantics<parallel>], iteration_bounds = array<i64: 2>, scalar_prefetch = 0 : i64, scratch_operands = 0 : i64, tpu.core_type = #tpu.core_type<tc>, window_params = [{transform_indices = @transform_0, window_bounds = array<i64: 1, 8, 512>}, {pipeline_mode = #tpu.pipeline_mode<synchronous>, transform_indices = @transform_1, window_bounds = array<i64: 8, 128>}, {transform_indices = @transform_2, window_bounds = array<i64: 1, 8, 384>}]} {
    %c0 = arith.constant 0 : index
    %c0_0 = arith.constant 0 : index
    %c0_1 = arith.constant 0 : index
    %0 = vector.load %arg1[%c0, %c0_0, %c0_1] : memref<1x8x512xbf16, #tpu.memory_space<vmem>>, vector<1x8x512xbf16>
    %1 = vector.shape_cast %0 : vector<1x8x512xbf16> to vector<8x512xbf16>
    %2 = arith.extf %1 : vector<8x512xbf16> to vector<8x512xf32>
    %3 = vector.extract_strided_slice %2 {offsets = [0, 0], sizes = [8, 384], strides = [1, 1]} : vector<8x512xf32> to vector<8x384xf32>
    %4 = vector.extract_strided_slice %2 {offsets = [0, 1], sizes = [8, 384], strides = [1, 1]} : vector<8x512xf32> to vector<8x384xf32>
    %5 = vector.extract_strided_slice %2 {offsets = [0, 2], sizes = [8, 384], strides = [1, 1]} : vector<8x512xf32> to vector<8x384xf32>
    %6 = vector.extract_strided_slice %2 {offsets = [0, 19], sizes = [8, 384], strides = [1, 1]} : vector<8x512xf32> to vector<8x384xf32>
    %7 = vector.extract_strided_slice %2 {offsets = [0, 20], sizes = [8, 384], strides = [1, 1]} : vector<8x512xf32> to vector<8x384xf32>
    %8 = vector.extract_strided_slice %2 {offsets = [0, 21], sizes = [8, 384], strides = [1, 1]} : vector<8x512xf32> to vector<8x384xf32>
    %9 = vector.extract_strided_slice %2 {offsets = [0, 38], sizes = [8, 384], strides = [1, 1]} : vector<8x512xf32> to vector<8x384xf32>
    %10 = vector.extract_strided_slice %2 {offsets = [0, 39], sizes = [8, 384], strides = [1, 1]} : vector<8x512xf32> to vector<8x384xf32>
    %11 = vector.extract_strided_slice %2 {offsets = [0, 40], sizes = [8, 384], strides = [1, 1]} : vector<8x512xf32> to vector<8x384xf32>
    %cst = arith.constant 0.000000e+00 : f32
    %12 = vector.broadcast %cst : f32 to vector<56x384xf32>
    %13 = tpu.concatenate %3, %4, %5, %6, %7, %8, %9, %10, %11, %12 in 0 : vector<8x384xf32>, vector<8x384xf32>, vector<8x384xf32>, vector<8x384xf32>, vector<8x384xf32>, vector<8x384xf32>, vector<8x384xf32>, vector<8x384xf32>, vector<8x384xf32>, vector<56x384xf32> -> vector<128x384xf32>
    %c0_2 = arith.constant 0 : index
    %c0_3 = arith.constant 0 : index
    %14 = vector.load %arg2[%c0_2, %c0_3] : memref<8x128xbf16, #tpu.memory_space<vmem>>, vector<8x128xbf16>
    %15 = arith.extf %14 : vector<8x128xbf16> to vector<8x128xf32>
    %cst_4 = arith.constant dense<0.000000e+00> : vector<8x384xf32>
    %16 = tpu.matmul %15, %13, %cst_4 {dimension_numbers = #tpu.dot_dimension_numbers<[1], [0], [0], [1], [0, 0, 1, 1], [], []>} : vector<8x128xf32>, vector<128x384xf32>, vector<8x384xf32> -> vector<8x384xf32>
    %17 = tpu.iota {dimensions = array<i32: 1>} : vector<1x384xi32>
    %18 = arith.sitofp %17 : vector<1x384xi32> to vector<1x384xf32>
    %cst_5 = arith.constant 5.000000e-01 : f32
    %19 = vector.broadcast %cst_5 : f32 to vector<1x384xf32>
    %20 = arith.addf %18, %19 : vector<1x384xf32>
    %cst_6 = arith.constant 0.0526315793 : f32
    %21 = vector.broadcast %cst_6 : f32 to vector<1x384xf32>
    %22 = arith.mulf %20, %21 : vector<1x384xf32>
    %23 = math.floor %22 : vector<1x384xf32>
    %cst_7 = arith.constant 1.900000e+01 : f32
    %24 = vector.broadcast %cst_7 : f32 to vector<1x384xf32>
    %25 = arith.mulf %23, %24 : vector<1x384xf32>
    %26 = arith.subf %18, %25 : vector<1x384xf32>
    %cst_8 = arith.constant 3.230000e+02 : f32
    %27 = vector.broadcast %cst_8 : f32 to vector<1x384xf32>
    %28 = arith.cmpf olt, %18, %27 : vector<1x384xf32>
    %cst_9 = arith.constant 1.650000e+01 : f32
    %29 = vector.broadcast %cst_9 : f32 to vector<1x384xf32>
    %30 = arith.cmpf olt, %26, %29 : vector<1x384xf32>
    %31 = arith.andi %28, %30 : vector<1x384xi1>
    %cst_10 = arith.constant 1.000000e+00 : f32
    %cst_11 = arith.constant 0.000000e+00 : f32
    %32 = vector.broadcast %cst_10 : f32 to vector<1x384xf32>
    %33 = vector.broadcast %cst_11 : f32 to vector<1x384xf32>
    %34 = arith.select %31, %32, %33 : vector<1x384xi1>, vector<1x384xf32>
    %35 = vector.broadcast %34 : vector<1x384xf32> to vector<8x384xf32>
    %36 = arith.mulf %16, %35 : vector<8x384xf32>
    %cst_12 = arith.constant dense<0.000000e+00> : vector<8xf32>
    %37 = vector.multi_reduction <add>, %36, %cst_12 [1] : vector<8x384xf32> to vector<8xf32>
    %38 = vector.shape_cast %37 : vector<8xf32> to vector<8x1xf32>
    %cst_13 = arith.constant 0.00346020772 : f32
    %39 = vector.broadcast %cst_13 : f32 to vector<8x1xf32>
    %40 = arith.mulf %38, %39 : vector<8x1xf32>
    %41 = vector.broadcast %40 : vector<8x1xf32> to vector<8x384xf32>
    %42 = arith.subf %16, %41 : vector<8x384xf32>
    %43 = vector.broadcast %34 : vector<1x384xf32> to vector<8x384xf32>
    %44 = arith.mulf %42, %43 : vector<8x384xf32>
    %45 = arith.mulf %44, %44 : vector<8x384xf32>
    %cst_14 = arith.constant dense<0.000000e+00> : vector<8xf32>
    %46 = vector.multi_reduction <add>, %45, %cst_14 [1] : vector<8x384xf32> to vector<8xf32>
    %47 = vector.shape_cast %46 : vector<8xf32> to vector<8x1xf32>
    %cst_15 = arith.constant 0.00346020772 : f32
    %48 = vector.broadcast %cst_15 : f32 to vector<8x1xf32>
    %49 = arith.mulf %47, %48 : vector<8x1xf32>
    %cst_16 = arith.constant 9.99999974E-6 : f32
    %50 = vector.broadcast %cst_16 : f32 to vector<8x1xf32>
    %51 = arith.addf %49, %50 : vector<8x1xf32>
    %52 = math.rsqrt %51 : vector<8x1xf32>
    %53 = vector.broadcast %52 : vector<8x1xf32> to vector<8x384xf32>
    %54 = arith.mulf %44, %53 : vector<8x384xf32>
    %cst_17 = arith.constant 0.000000e+00 : f32
    %55 = vector.broadcast %cst_17 : f32 to vector<8x384xf32>
    %56 = arith.maximumf %54, %55 : vector<8x384xf32>
    %c0_18 = arith.constant 0 : index
    %c0_19 = arith.constant 0 : index
    %c0_20 = arith.constant 0 : index
    %57 = vector.load %arg3[%c0_18, %c0_19, %c0_20] : memref<1x8x384xf32, #tpu.memory_space<vmem>>, vector<1x8x384xf32>
    %58 = vector.shape_cast %57 : vector<1x8x384xf32> to vector<8x384xf32>
    %59 = vector.shape_cast %56 : vector<8x384xf32> to vector<1x8x384xf32>
    tpu.vector_store %arg3[%c0_18, %c0_19, %c0_20], %59 {strides = array<i32>} : memref<1x8x384xf32, #tpu.memory_space<vmem>>, vector<1x8x384xf32>,
    return
  }
  func.func @transform_0(%arg0: i32) -> (i32, i32, i32) {
    %c0_i32 = arith.constant 0 : i32
    %c0_i32_0 = arith.constant 0 : i32
    %c0_i32_1 = arith.constant 0 : i32
    return %arg0, %c0_i32, %c0_i32_0 : i32, i32, i32
  }
  func.func @transform_1(%arg0: i32) -> (i32, i32) {
    %c0_i32 = arith.constant 0 : i32
    %c0_i32_0 = arith.constant 0 : i32
    %c0_i32_1 = arith.constant 0 : i32
    return %c0_i32, %c0_i32_0 : i32, i32
  }
  func.func @transform_2(%arg0: i32) -> (i32, i32, i32) {
    %c0_i32 = arith.constant 0 : i32
    %c0_i32_0 = arith.constant 0 : i32
    %c0_i32_1 = arith.constant 0 : i32
    return %arg0, %c0_i32, %c0_i32_0 : i32, i32, i32
  }
}

</mosaic_0001>

<llo_original>
// kernel: deconv2d_forward.1
$region0: #{deconv2d_forward.1}
  #allocation0 [shape = 'u32[]', space=smem, size = 0x4, offset = 0x4, fixed_abs, tag = 'smem constant byte address 0x4 - core index']
  #allocation1 [shape = 'u32[144,128]{1,0:T(1,128)}', space=vmem, size = 0x12000, scoped, tag = 'internal scratch']
  %s0 = inlined_call_operand.vmem [shape: bf16[2,8,512], index: 0, kind: input, shape index: {}]
  %s1 = inlined_call_operand.vmem [shape: bf16[8,128], index: 1, kind: input, shape index: {}]
  %s2 = inlined_call_operand.vmem [shape: f32[2,8,384], index: 2, kind: output, shape index: {}]
  %s3 = sld [smem:[#allocation0]]
  $region41: #{deconv2d_forward.1} parent=0
    _
  %s5 = ssub.s32 1, %s3
  %s6 = scalar_select 0, %s5, %s3
  loop: start=0, step=1, limit=4
  $region2: #{deconv2d_forward.1} parent=0 // loop_pre_header
    _
  $region3: #{deconv2d_forward.1} parent=0 // loop_header
    %s8 = sphi 0, %s12
    %p9 = scmp.ge.s32.totalorder %s8, 4
    %s18 = sphi 0, %s20
    %s21 = sphi 0, %s18
    %s22 = sphi 0, %s21
    %s38 = sphi 0, %s22
    %s42 = sphi 0, %s42
    %s44 = sphi 0, %s42
    %s45 = sphi 0, %s44
    %s59 = sphi 0, %s45
    %s65 = sphi 0, %s67
    %s68 = sphi 0, %s65
    %s69 = sphi 0, %s68
    %s85 = sphi 0, %s69
  $region4: #{deconv2d_forward.1} parent=0 // loop_header_branch
    %11 = sbr.rel (%p9) target = $region8
  $region5: #{deconv2d_forward.1} parent=0 // loop_body
    %s13 = ssub.s32 %s8, 1
    %s14 = ssub.s32 %s8, 2
    %s15 = sadd.s32 %s8, 1
    %s16 = ssub.s32 %s8, %s15
    %p17 = scmp.eq.s32.totalorder %s16, 0
    %s19 = sadd.s32 %s18, 1
    %s20 = scalar_select %p17, %s18, %s19
    %p23 = pneg %p17
    %p24 = scmp.eq.s32.totalorder %s8, 1
    %p25 = por %p23, %p24
    %p26 = scmp.ne.s32.totalorder %s18, %s21
    %p27 = scmp.eq.s32.totalorder %s8, 0
    %p28 = por %p26, %p27
    %p29 = scmp.ne.s32.totalorder %s18, %s21
    %p30 = scmp.eq.s32.totalorder %s13, 1
    %p31 = por %p29, %p30
    %p32 = scmp.ne.s32.totalorder %s21, %s22
    %p33 = scmp.eq.s32.totalorder %s13, 0
    %p34 = por %p32, %p33
    %p35 = scmp.ne.s32.totalorder %s21, %s22
    %p36 = scmp.eq.s32.totalorder %s14, 1
    %p37 = por %p35, %p36
    %p39 = scmp.ne.s32.totalorder %s22, %s38
    %p40 = scmp.eq.s32.totalorder %s14, 0
    %p41 = por %p39, %p40
    %s43 = sadd.s32 %s42, 1
    %p46 = scmp.eq.s32.totalorder %s8, 1
    %p47 = scmp.ne.s32.totalorder %s42, %s44
    %p48 = scmp.eq.s32.totalorder %s8, 0
    %p49 = por %p47, %p48
    %p50 = scmp.ne.s32.totalorder %s42, %s44
    %p51 = scmp.eq.s32.totalorder %s13, 1
    %p52 = por %p50, %p51
    %p53 = scmp.ne.s32.totalorder %s44, %s45
    %p54 = scmp.eq.s32.totalorder %s13, 0
    %p55 = por %p53, %p54
    %p56 = scmp.ne.s32.totalorder %s44, %s45
    %p57 = scmp.eq.s32.totalorder %s14, 1
    %p58 = por %p56, %p57
    %p60 = scmp.ne.s32.totalorder %s45, %s59
    %p61 = scmp.eq.s32.totalorder %s14, 0
    %p62 = por %p60, %p61
    %s63 = ssub.s32 %s8, %s15
    %p64 = scmp.eq.s32.totalorder %s63, 0
    %s66 = sadd.s32 %s65, 1
    %s67 = scalar_select %p64, %s65, %s66
    %p70 = pneg %p64
    %p71 = scmp.eq.s32.totalorder %s8, 1
    %p72 = por %p70, %p71
    %p73 = scmp.ne.s32.totalorder %s65, %s68
    %p74 = scmp.eq.s32.totalorder %s8, 0
    %p75 = por %p73, %p74
    %p76 = scmp.ne.s32.totalorder %s65, %s68
    %p77 = scmp.eq.s32.totalorder %s13, 1
    %p78 = por %p76, %p77
    %p79 = scmp.ne.s32.totalorder %s68, %s69
    %p80 = scmp.eq.s32.totalorder %s13, 0
    %p81 = por %p79, %p80
    %p82 = scmp.ne.s32.totalorder %s68, %s69
    %p83 = scmp.eq.s32.totalorder %s14, 1
    %p84 = por %p82, %p83
    %p86 = scmp.ne.s32.totalorder %s69, %s85
    %p87 = scmp.eq.s32.totalorder %s14, 0
    %p88 = por %p86, %p87
    %p89 = scmp.le.s32.totalorder 1, %s8
    %p90 = scmp.lt.s32.totalorder %s8, 3
    %p91 = pnand %p89, %p90
    %p92 = pneg %p91
    // Predicated region
    $region9: #{deconv2d_forward.1} parent=5 // pred_check
      _
    $region10: #{deconv2d_forward.1} parent=5 // pred_check_branch
      %94 = sbr.rel (%p91) target = $region12
    $region11: #{deconv2d_forward.1} parent=5 // pred_region
      %s95 = ssub.s32 %s8, 1
      // Predicated region
      $region13: #{deconv2d_forward.1} parent=11 // pred_check
        %p96 = pneg %p55
      $region14: #{deconv2d_forward.1} parent=11 // pred_check_branch
        %98 = sbr.rel (%p96) target = $region16
      $region15: #{deconv2d_forward.1} parent=11 // pred_region
        _
      $region16: #{deconv2d_forward.1} parent=11 // pred_fallthru
        _
    $region12: #{deconv2d_forward.1} parent=5 // pred_fallthru
      _
    %p99 = scmp.lt.s32.totalorder %s8, 2
    // Predicated region
    $region17: #{deconv2d_forward.1} parent=5 // pred_check
      %p100 = pneg %p99
    $region18: #{deconv2d_forward.1} parent=5 // pred_check_branch
      %102 = sbr.rel (%p100) target = $region20
    $region19: #{deconv2d_forward.1} parent=5 // pred_region
      // Predicated region
      $region21: #{deconv2d_forward.1} parent=19 // pred_check
        %p103 = pneg %p28
      $region22: #{deconv2d_forward.1} parent=19 // pred_check_branch
        %105 = sbr.rel (%p103) target = $region24
      $region23: #{deconv2d_forward.1} parent=19 // pred_region
        %p106 = scmp.lt.s32.totalorder %s8, 1
        %s107 = scalar_select %p106, %s8, 1
        %s108 = smul.addr %s107, 4
        %s109 = smul.addr %s108, 4
        %s110 = scalar_lea.vmem %s0, %s109
      $region24: #{deconv2d_forward.1} parent=19 // pred_fallthru
        _
    $region20: #{deconv2d_forward.1} parent=5 // pred_fallthru
      _
    %p111 = scmp.le.s32.totalorder 1, %s8
    %p112 = scmp.lt.s32.totalorder %s8, 3
    %p113 = pnand %p111, %p112
    %p114 = pneg %p113
    // Predicated region
    $region25: #{deconv2d_forward.1} parent=5 // pred_check
      _
    $region26: #{deconv2d_forward.1} parent=5 // pred_check_branch
      %116 = sbr.rel (%p113) target = $region28
    $region27: #{deconv2d_forward.1} parent=5 // pred_region
      %s117 = ssub.s32 %s8, 1
      %p118 = scmp.lt.s32.totalorder %s13, 1
      %s119 = scalar_select %p118, %s13, 1
      %s120 = smul.addr %s119, 4
      %s121 = smul.addr %s120, 4
      %s122 = scalar_lea.vmem %s0, %s121
      %p123 = pneg %p34
      %p124 = pneg %p31
      %p125 = pneg %p55
      %p126 = pneg %p52
      %p127 = pneg %p81
      %p128 = pneg %p78
      %p129 = scmp.lt.s32.totalorder %s13, 1
      %s130 = scalar_select %p129, %s13, 1
      %s131 = smul.addr %s130, 3
      %s132 = smul.addr %s131, 8
      %s133 = scalar_lea.vmem %s2, %s132
      %p134 = scmp.lt.s32.totalorder %s13, 1
      %s135 = scalar_select %p134, %s13, 1
      %s136 = smul.addr %s135, 4
      %s137 = smul.addr %s136, 4
      %s138 = scalar_lea.vmem %s0, %s137
      %p139 = scmp.lt.s32.totalorder %s13, 1
      %s140 = scalar_select %p139, %s13, 1
      %s141 = smul.addr %s140, 3
      %s142 = smul.addr %s141, 8
      %s143 = scalar_lea.vmem %s2, %s142
      %v144 = vld [vmem:[%s138] sm:$0xff]
      %v145 = vld [vmem:[%s138 + $0x8] sm:$0xff]
      %v146 = vunpack.c.l.bf16 %v144
      %v147 = vunpack.c.h.bf16 %v144
      %v148 = vunpack.c.l.bf16 %v145
      %v149 = vunpack.c.h.bf16 %v145
      %154 = vrot.lane.b32.xlu0 %v146, 127
      %v155 = vpop.permute.xlu0 %154
      %156 = vrot.lane.b32.xlu0 %v147, 127
      %v157 = vpop.permute.xlu0 %156
      %158 = vrot.lane.b32.xlu0 %v148, 127
      %v159 = vpop.permute.xlu0 %158
      %160 = vrot.lane.b32.xlu0 %v149, 127
      %v161 = vpop.permute.xlu0 %160
      %vm162 = vcmask 1039360
      %v163 = vsel %vm162, %v155, %v157
      %v164 = vsel %vm162, %v157, %v159
      %v165 = vsel %vm162, %v159, %v161
      %169 = vrot.lane.b32.xlu0 %v146, 126
      %v170 = vpop.permute.xlu0 %169
      %171 = vrot.lane.b32.xlu0 %v147, 126
      %v172 = vpop.permute.xlu0 %171
      %173 = vrot.lane.b32.xlu0 %v148, 126
      %v174 = vpop.permute.xlu0 %173
      %175 = vrot.lane.b32.xlu0 %v149, 126
      %v176 = vpop.permute.xlu0 %175
      %vm177 = vcmask 1031168
      %v178 = vsel %vm177, %v170, %v172
      %v179 = vsel %vm177, %v172, %v174
      %v180 = vsel %vm177, %v174, %v176
      %184 = vrot.lane.b32.xlu0 %v146, 109
      %v185 = vpop.permute.xlu0 %184
      %186 = vrot.lane.b32.xlu0 %v147, 109
      %v187 = vpop.permute.xlu0 %186
      %188 = vrot.lane.b32.xlu0 %v148, 109
      %v189 = vpop.permute.xlu0 %188
      %190 = vrot.lane.b32.xlu0 %v149, 109
      %v191 = vpop.permute.xlu0 %190
      %vm192 = vcmask 891904
      %v193 = vsel %vm192, %v185, %v187
      %v194 = vsel %vm192, %v187, %v189
      %v195 = vsel %vm192, %v189, %v191
      %199 = vrot.lane.b32.xlu0 %v146, 108
      %v200 = vpop.permute.xlu0 %199
      %201 = vrot.lane.b32.xlu0 %v147, 108
      %v202 = vpop.permute.xlu0 %201
      %203 = vrot.lane.b32.xlu0 %v148, 108
      %v204 = vpop.permute.xlu0 %203
      %205 = vrot.lane.b32.xlu0 %v149, 108
      %v206 = vpop.permute.xlu0 %205
      %vm207 = vcmask 883712
      %v208 = vsel %vm207, %v200, %v202
      %v209 = vsel %vm207, %v202, %v204
      %v210 = vsel %vm207, %v204, %v206
      %214 = vrot.lane.b32.xlu0 %v146, 107
      %v215 = vpop.permute.xlu0 %214
      %216 = vrot.lane.b32.xlu0 %v147, 107
      %v217 = vpop.permute.xlu0 %216
      %218 = vrot.lane.b32.xlu0 %v148, 107
      %v219 = vpop.permute.xlu0 %218
      %220 = vrot.lane.b32.xlu0 %v149, 107
      %v221 = vpop.permute.xlu0 %220
      %vm222 = vcmask 875520
      %v223 = vsel %vm222, %v215, %v217
      %v224 = vsel %vm222, %v217, %v219
      %v225 = vsel %vm222, %v219, %v221
      %229 = vrot.lane.b32.xlu0 %v146, 90
      %v230 = vpop.permute.xlu0 %229
      %231 = vrot.lane.b32.xlu0 %v147, 90
      %v232 = vpop.permute.xlu0 %231
      %233 = vrot.lane.b32.xlu0 %v148, 90
      %v234 = vpop.permute.xlu0 %233
      %235 = vrot.lane.b32.xlu0 %v149, 90
      %v236 = vpop.permute.xlu0 %235
      %vm237 = vcmask 736256
      %v238 = vsel %vm237, %v230, %v232
      %v239 = vsel %vm237, %v232, %v234
      %v240 = vsel %vm237, %v234, %v236
      %244 = vrot.lane.b32.xlu0 %v146, 89
      %v245 = vpop.permute.xlu0 %244
      %246 = vrot.lane.b32.xlu0 %v147, 89
      %v247 = vpop.permute.xlu0 %246
      %248 = vrot.lane.b32.xlu0 %v148, 89
      %v249 = vpop.permute.xlu0 %248
      %250 = vrot.lane.b32.xlu0 %v149, 89
      %v251 = vpop.permute.xlu0 %250
      %vm252 = vcmask 728064
      %v253 = vsel %vm252, %v245, %v247
      %v254 = vsel %vm252, %v247, %v249
      %v255 = vsel %vm252, %v249, %v251
      %259 = vrot.lane.b32.xlu0 %v146, 88
      %v260 = vpop.permute.xlu0 %259
      %261 = vrot.lane.b32.xlu0 %v147, 88
      %v262 = vpop.permute.xlu0 %261
      %263 = vrot.lane.b32.xlu0 %v148, 88
      %v264 = vpop.permute.xlu0 %263
      %265 = vrot.lane.b32.xlu0 %v149, 88
      %v266 = vpop.permute.xlu0 %265
      %vm267 = vcmask 719872
      %v268 = vsel %vm267, %v260, %v262
      %v269 = vsel %vm267, %v262, %v264
      %v270 = vsel %vm267, %v264, %v266
      %v274 = vld [vmem:[%s1] sm:$0xf]
      %v275 = vunpack.c.l.bf16 %v274
      %276 = vmatprep.subr.mxu0 %v147
      %277 = vmatpush1.msra.mxu0 %v146
      %278 = vmatprep.subr.mxu0 %v164
      %279 = vmatpush1.msra.mxu0 %v163
      %280 = vmatprep.subr.mxu0 %v179
      %281 = vmatpush1.msra.mxu0 %v178
      %282 = vmatprep.subr.mxu0 %v194
      %283 = vmatpush1.msra.mxu0 %v193
      %284 = vmatprep.subr.mxu0 %v209
      %285 = vmatpush1.msra.mxu0 %v208
      %286 = vmatprep.subr.mxu0 %v224
      %287 = vmatpush1.msra.mxu0 %v223
      %288 = vmatprep.subr.mxu0 %v239
      %289 = vmatpush1.msra.mxu0 %v238
      %290 = vmatprep.subr.mxu0 %v254
      %291 = vmatpush1.msra.mxu0 %v253
      %292 = vmatprep.subr.mxu0 %v269
      %293 = vmatpush1.msra.mxu0 %v268
      %294 = vmatprep.subr.mxu0 0.0
      %295 = vmatpush1.msra.mxu0 0.0
      %296 = vmatprep.subr.mxu0 0.0
      %297 = vmatpush1.msra.mxu0 0.0
      %298 = vmatprep.subr.mxu0 0.0
      %299 = vmatpush1.msra.mxu0 0.0
      %300 = vmatprep.subr.mxu0 0.0
      %301 = vmatpush1.msra.mxu0 0.0
      %302 = vmatprep.subr.mxu0 0.0
      %303 = vmatpush1.msra.mxu0 0.0
      %304 = vmatprep.subr.mxu0 0.0
      %305 = vmatpush1.msra.mxu0 0.0
      %306 = vmatprep.subr.mxu0 0.0
      %307 = vmatpush1.msra.mxu0 0.0
      %308 = vmatprep.subr.mxu0 0.0
      %309 = vmatpush1.msra.mxu0 0.0
      %310 = vmatprep.subr.mxu0 0.0
      %311 = vmatpush1.msra.mxu0 0.0
      %312 = vmatprep.subr.mxu0 0.0
      %313 = vmatpush1.msra.mxu0 0.0
      %314 = vmatprep.subr.mxu0 0.0
      %315 = vmatpush1.msra.mxu0 0.0
      %316 = vmatprep.subr.mxu0 0.0
      %317 = vmatpush1.msra.mxu0 0.0
      %318 = vmatprep.subr.mxu0 0.0
      %319 = vmatpush1.msra.mxu0 0.0
      %320 = vmatprep.subr.mxu0 0.0
      %321 = vmatpush1.msra.mxu0 0.0
      %322 = vmatprep.subr.mxu0 0.0
      %323 = vmatpush1.msra.mxu0 0.0
      %324 = vmatprep.subr.mxu0 0.0
      %325 = vmatpush1.msra.mxu0 0.0
      %326 = vmatprep.subr.mxu0 0.0
      %327 = vmatpush1.msra.mxu0 0.0
      %328 = vmatprep.subr.mxu0 0.0
      %329 = vmatpush1.msra.mxu0 0.0
      %330 = vmatprep.subr.mxu0 0.0
      %331 = vmatpush1.msra.mxu0 0.0
      %332 = vmatprep.subr.mxu0 0.0
      %333 = vmatpush1.msra.mxu0 0.0
      %334 = vmatprep.subr.mxu0 0.0
      %335 = vmatpush1.msra.mxu0 0.0
      %336 = vmatprep.subr.mxu0 0.0
      %337 = vmatpush1.msra.mxu0 0.0
      %338 = vmatprep.subr.mxu0 0.0
      %339 = vmatpush1.msra.mxu0 0.0
      %340 = vmatprep.mubr.f32.mxu0 0.0
      %341 = vmatmul.mubr.f32.gmra.mrb[0].mxu0 %v275
      %v342 = vpop.f32.mrb[0].mxu0
      %v343 = vadd.f32 0.0, %v342
      %v344 = vpop.f32.mrb[0].mxu0
      %v345 = vadd.f32 0.0, %v344
      %346 = vdwg.mxu0
      %347 = vmatprep.subr.mxu0 0.0
      %348 = vmatpush1.msra.mxu0 %v148
      %349 = vmatprep.subr.mxu0 0.0
      %350 = vmatpush1.msra.mxu0 %v165
      %351 = vmatprep.subr.mxu0 0.0
      %352 = vmatpush1.msra.mxu0 %v180
      %353 = vmatprep.subr.mxu0 0.0
      %354 = vmatpush1.msra.mxu0 %v195
      %355 = vmatprep.subr.mxu0 0.0
      %356 = vmatpush1.msra.mxu0 %v210
      %357 = vmatprep.subr.mxu0 0.0
      %358 = vmatpush1.msra.mxu0 %v225
      %359 = vmatprep.subr.mxu0 0.0
      %360 = vmatpush1.msra.mxu0 %v240
      %361 = vmatprep.subr.mxu0 0.0
      %362 = vmatpush1.msra.mxu0 %v255
      %363 = vmatprep.subr.mxu0 0.0
      %364 = vmatpush1.msra.mxu0 %v270
      %365 = vmatprep.subr.mxu0 0.0
      %366 = vmatpush1.msra.mxu0 0.0
      %367 = vmatprep.subr.mxu0 0.0
      %368 = vmatpush1.msra.mxu0 0.0
      %369 = vmatprep.subr.mxu0 0.0
      %370 = vmatpush1.msra.mxu0 0.0
      %371 = vmatprep.subr.mxu0 0.0
      %372 = vmatpush1.msra.mxu0 0.0
      %373 = vmatprep.subr.mxu0 0.0
      %374 = vmatpush1.msra.mxu0 0.0
      %375 = vmatprep.subr.mxu0 0.0
      %376 = vmatpush1.msra.mxu0 0.0
      %377 = vmatprep.subr.mxu0 0.0
      %378 = vmatpush1.msra.mxu0 0.0
      %379 = vmatprep.subr.mxu0 0.0
      %380 = vmatpush1.msra.mxu0 0.0
      %381 = vmatprep.subr.mxu0 0.0
      %382 = vmatpush1.msra.mxu0 0.0
      %383 = vmatprep.subr.mxu0 0.0
      %384 = vmatpush1.msra.mxu0 0.0
      %385 = vmatprep.subr.mxu0 0.0
      %386 = vmatpush1.msra.mxu0 0.0
      %387 = vmatprep.subr.mxu0 0.0
      %388 = vmatpush1.msra.mxu0 0.0
      %389 = vmatprep.subr.mxu0 0.0
      %390 = vmatpush1.msra.mxu0 0.0
      %391 = vmatprep.subr.mxu0 0.0
      %392 = vmatpush1.msra.mxu0 0.0
      %393 = vmatprep.subr.mxu0 0.0
      %394 = vmatpush1.msra.mxu0 0.0
      %395 = vmatprep.subr.mxu0 0.0
      %396 = vmatpush1.msra.mxu0 0.0
      %397 = vmatprep.subr.mxu0 0.0
      %398 = vmatpush1.msra.mxu0 0.0
      %399 = vmatprep.subr.mxu0 0.0
      %400 = vmatpush1.msra.mxu0 0.0
      %401 = vmatprep.subr.mxu0 0.0
      %402 = vmatpush1.msra.mxu0 0.0
      %403 = vmatprep.subr.mxu0 0.0
      %404 = vmatpush1.msra.mxu0 0.0
      %405 = vmatprep.subr.mxu0 0.0
      %406 = vmatpush1.msra.mxu0 0.0
      %407 = vmatprep.subr.mxu0 0.0
      %408 = vmatpush1.msra.mxu0 0.0
      %409 = vmatprep.subr.mxu0 0.0
      %410 = vmatpush1.msra.mxu0 0.0
      %411 = vmatprep.mubr.f32.mxu0 0.0
      %412 = vmatmul.mubr.f32.gmra.mrb[0].mxu0 %v275
      %v413 = vpop.f32.mrb[0].mxu0
      %v414 = vadd.f32 0.0, %v413
      %v415 = vpop.f32.mrb[0].mxu0
      %416 = vdwg.mxu0
      %v417 = vlaneseq
      %v418 = vand.u32 %v417, 127
      %v419 = vadd.s32 %v418, 128
      %v420 = vadd.s32 %v418, 256
      %v421 = vcvt.s32.f32 %v418
      %v422 = vcvt.s32.f32 %v419
      %v423 = vcvt.s32.f32 %v420
      %v424 = vadd.f32 %v421, 0.5
      %v425 = vadd.f32 %v422, 0.5
      %v426 = vadd.f32 %v423, 0.5
      %v427 = vmul.f32 %v424, 0.05263158
      %v428 = vmul.f32 %v425, 0.05263158
      %v429 = vmul.f32 %v426, 0.05263158
      %v430 = vfloor.f32 %v427
      %v431 = vfloor.f32 %v428
      %v432 = vfloor.f32 %v429
      %v433 = vmul.f32 %v430, 19.0
      %v434 = vmul.f32 %v431, 19.0
      %v435 = vmul.f32 %v432, 19.0
      %v436 = vsub.f32 %v421, %v433
      %v437 = vsub.f32 %v422, %v434
      %v438 = vsub.f32 %v423, %v435
      %vm439 = vcmp.lt.f32.partialorder %v421, 323.0
      %vm440 = vcmp.lt.f32.partialorder %v422, 323.0
      %vm441 = vcmp.lt.f32.partialorder %v423, 323.0
      %vm442 = vcmp.lt.f32.partialorder %v436, 16.5
      %vm443 = vcmp.lt.f32.partialorder %v437, 16.5
      %vm444 = vcmp.lt.f32.partialorder %v438, 16.5
      %vm445 = vmand %vm439, %vm442
      %vm446 = vmand %vm440, %vm443
      %vm447 = vmand %vm441, %vm444
      %v448 = vsel %vm445, 1.0, 0.0
      %v449 = vsel %vm446, 1.0, 0.0
      %v450 = vsel %vm447, 1.0, 0.0
      %v451 = vmul.f32 %v343, %v448
      %v452 = vmul.f32 %v345, %v449
      %v453 = vmul.f32 %v414, %v450
      %v454 = vadd.f32 %v451, %v452
      %v455 = vadd.f32 %v454, %v453
      %456 = vadd.xlane.f32.xlu0 %v455
      %v457 = vpop.xlane.xlu0 %456
      %v458 = vmul.f32 %v457, 0.0034602077
      %v459 = vsub.f32 %v343, %v458
      %v460 = vsub.f32 %v345, %v458
      %v461 = vsub.f32 %v414, %v458
      %v462 = vmul.f32 %v459, %v448
      %v463 = vmul.f32 %v460, %v449
      %v464 = vmul.f32 %v461, %v450
      %v465 = vmul.f32 %v462, %v462
      %v466 = vmul.f32 %v463, %v463
      %v467 = vmul.f32 %v464, %v464
      %v468 = vadd.f32 %v465, %v466
      %v469 = vadd.f32 %v468, %v467
      %470 = vadd.xlane.f32.xlu0 %v469
      %v471 = vpop.xlane.xlu0 %470
      %v472 = vmul.f32 %v471, 0.0034602077
      %v473 = vadd.f32 %v472, 1e-05
      %v474 = vrsqrt.pop %v473
      %v475 = vmul.f32 %v462, %v474
      %v476 = vmul.f32 %v463, %v474
      %v477 = vmul.f32 %v464, %v474
      %v478 = vmax.f32 %v475, 0.0
      %v479 = vmax.f32 %v476, 0.0
      %v480 = vmax.f32 %v477, 0.0
      %481 = vst [vmem:[%s143] sm:$0xff] %v478
      %482 = vst [vmem:[%s143 + $0x8] sm:$0xff] %v479
      %483 = vst [vmem:[%s143 + $0x10] sm:$0xff] %v480
      %p484 = scmp.lt.s32.totalorder %s13, 1
      %s485 = scalar_select %p484, %s13, 1
      %s486 = smul.addr %s485, 3
      %s487 = smul.addr %s486, 8
      %s488 = scalar_lea.vmem %s2, %s487
      // Predicated region
      $region29: #{deconv2d_forward.1} parent=27 // pred_check
        %p489 = pneg %p78
      $region30: #{deconv2d_forward.1} parent=27 // pred_check_branch
        %491 = sbr.rel (%p489) target = $region32
      $region31: #{deconv2d_forward.1} parent=27 // pred_region
        _
      $region32: #{deconv2d_forward.1} parent=27 // pred_fallthru
        _
    $region28: #{deconv2d_forward.1} parent=5 // pred_fallthru
      _
    %p492 = scmp.le.s32.totalorder 2, %s8
    // Predicated region
    $region33: #{deconv2d_forward.1} parent=5 // pred_check
      %p493 = pneg %p492
    $region34: #{deconv2d_forward.1} parent=5 // pred_check_branch
      %495 = sbr.rel (%p493) target = $region36
    $region35: #{deconv2d_forward.1} parent=5 // pred_region
      %s496 = ssub.s32 %s8, 2
      // Predicated region
      $region37: #{deconv2d_forward.1} parent=35 // pred_check
        %p497 = pneg %p84
      $region38: #{deconv2d_forward.1} parent=35 // pred_check_branch
        %499 = sbr.rel (%p497) target = $region40
      $region39: #{deconv2d_forward.1} parent=35 // pred_region
        %p500 = scmp.lt.s32.totalorder %s14, 1
        %s501 = scalar_select %p500, %s14, 1
        %s502 = smul.addr %s501, 3
        %s503 = smul.addr %s502, 8
        %s504 = scalar_lea.vmem %s2, %s503
      $region40: #{deconv2d_forward.1} parent=35 // pred_fallthru
        _
    $region36: #{deconv2d_forward.1} parent=5 // pred_fallthru
      _
  $region6: #{deconv2d_forward.1} parent=0 // loop_footer
    %s12 = sadd.s32 1, %s8
  $region7: #{deconv2d_forward.1} parent=0 // loop_footer_branch
    %7 = sbr.rel target = $region3
  $region8: #{deconv2d_forward.1} parent=0 // loop_exit
    _

</llo_original>
